<compile_context>
chip_gen: v7x
topology: tpu7x:2x2x1
jax: 0.10.0
libtpu: 0.0.40
codegen_flags: <defaults>
</compile_context>

<pallas_src>
import jax
import jax.numpy as jnp
from jax import lax
from jax.experimental import pallas as pl
from jax.experimental.pallas import tpu as pltpu


_VC = 8  # V-chunk size (one sublane group) for the online-logsumexp loop


def _round_up(x, m):
    return (x + m - 1) // m * m


def skipgram_nll_kernel(center_ref, target_ref, all_ref,
                        emb_v_ref, emb_ut_ref, out_ref):
    TB = center_ref.shape[0]          # batch tile
    V_pad = all_ref.shape[0]          # padded number of "all vocab" ids
    E, vocab = emb_ut_ref.shape
    n_chunks = V_pad // _VC
    NEG = jnp.float32(-1e30)          # finite "-inf" (avoids inf-inf NaNs)

    cidx = center_ref[...]            # (TB, 1)  int32
    trow = target_ref[...]            # (1, TB)  int32
    emb_v = emb_v_ref[...]            # (vocab, E)   table dtype (bf16/f32)
    emb_ut = emb_ut_ref[...]          # (E, vocab)   table dtype
    tdt = emb_v.dtype

    # Small iotas only: a (1,vocab) row and a (1,1,vocab) lane iota.  The big
    # (TB,V,vocab) iota of the previous version is never materialized.
    row_iota = lax.broadcasted_iota(jnp.int32, (1, vocab), 1)       # (1, vocab)
    lane_iota = lax.broadcasted_iota(jnp.int32, (1, 1, vocab), 2)   # (1, 1, vocab)

    # ---- center-word embedding gather: one-hot x table on the MXU ----
    oh_c = (cidx == row_iota).astype(tdt)                           # (TB, vocab)
    center = jnp.dot(oh_c, emb_v,
                     preferred_element_type=jnp.float32)            # (TB, E) f32

    # ---- uc[b, k] = <v_center_b, u_k>: (TB,E) @ (E,vocab), no RHS transpose.
    # center rows are exact table rows, so the cast back to the table dtype is
    # lossless (bf16 tables) or a no-op (f32 tables).
    uc = jnp.dot(center.astype(tdt), emb_ut,
                 preferred_element_type=jnp.float32)                # (TB, vocab)

    # ---- scores[0, b] = uc[b, target_b]: masked lane pick, already lane-dense.
    t_match = trow[:, :, None] == lane_iota                         # (1, TB, vocab)
    scores = jnp.sum(jnp.where(t_match, uc[None, :, :], 0.0),
                     axis=2)                                        # (1, TB)

    # ---- online (flash-style) logsumexp over all_vocabs, V tiled in VC chunks.
    # norm_scores[b, j] = uc[b, all_vocabs[b, j]]; only a (VC, TB, vocab) chunk
    # of mask/select traffic exists at any time.
    def body(c, carry):
        m_prev, l_prev = carry                                      # (1, TB) each
        start = pl.multiple_of(c * _VC, _VC)
        a_chunk = all_ref[pl.ds(start, _VC), :]                     # (VC, TB) int32
        match = a_chunk[:, :, None] == lane_iota                    # (VC, TB, vocab)
        picked = jnp.sum(jnp.where(match, uc[None, :, :], 0.0),
                         axis=2)                                    # (VC, TB)
        # V-padding entries carry id -1 -> contribute nothing.
        ns = jnp.where(a_chunk >= 0, picked, NEG)
        m_new = jnp.maximum(m_prev, jnp.max(ns, axis=0, keepdims=True))
        l_new = (l_prev * jnp.exp(m_prev - m_new)
                 + jnp.sum(jnp.exp(ns - m_new), axis=0, keepdims=True))
        return m_new, l_new

    m0 = jnp.full((1, TB), NEG, jnp.float32)
    l0 = jnp.zeros((1, TB), jnp.float32)
    m, l = lax.fori_loop(0, n_chunks, body, (m0, l0))

    # per-example loss = logsumexp(norm_scores) - scores; mean in the wrapper.
    out_ref[...] = m + jnp.log(l) - scores                          # (1, TB)


def skipgram_nll(center_words, target_words, all_vocabs, emb_v, emb_u,
                 *, block_b=128, table_dtype=jnp.bfloat16, interpret=False):
    """Scalar NLL matching Skipgram.forward.

    block_b: batch tile; 128 is a good default (raise to 256 on v6e, keep 128
             on v5e/v7x).  For B <= block_b a single tile is used.
    table_dtype: bf16 halves table VMEM and doubles MXU rate (one-hots and the
             gathered rows stay exact); pass jnp.float32 for f32 parity.
    """
    B = center_words.shape[0]
    V = all_vocabs.shape[1]
    vocab, E = emb_v.shape

    center_words = center_words.reshape(B, 1).astype(jnp.int32)
    target_words = target_words.reshape(B, 1).astype(jnp.int32)
    all_vocabs = all_vocabs.astype(jnp.int32)

    # Batch tiling: every lane-dim block is either a multiple of 128 or the
    # full (padded) batch, per the (8,128) BlockSpec rule.  For B > block_b the
    # grid has several "parallel" tiles (shards across v7x's 2 TensorCores).
    if B > block_b:
        assert block_b % 128 == 0, "block_b must be a multiple of 128"
        TB = block_b
        B_pad = _round_up(B, TB)
    else:
        B_pad = _round_up(B, 8)
        TB = B_pad
    pad_b = B_pad - B

    # V padded to a multiple of the in-kernel chunk; pad ids are -1 (masked out).
    V_pad = _round_up(V, _VC)

    center_p = jnp.pad(center_words, ((0, pad_b), (0, 0)))          # (B_pad, 1)
    target_row = jnp.pad(target_words, ((0, pad_b), (0, 0))).T      # (1, B_pad)
    all_p = jnp.pad(all_vocabs, ((0, 0), (0, V_pad - V)), constant_values=-1)
    all_p = jnp.pad(all_p, ((0, pad_b), (0, 0)))                    # (B_pad, V_pad)
    all_t = all_p.T                                                 # (V_pad, B_pad)

    emb_v_c = emb_v.astype(table_dtype)                             # (vocab, E)
    emb_ut_c = emb_u.T.astype(table_dtype)                          # (E, vocab)

    grid_spec = pltpu.PrefetchScalarGridSpec(
        num_scalar_prefetch=0,
        grid=(B_pad // TB,),
        in_specs=[
            pl.BlockSpec((TB, 1), lambda i: (i, 0)),       # center ids (streamed)
            pl.BlockSpec((1, TB), lambda i: (0, i)),       # target ids (streamed)
            pl.BlockSpec((V_pad, TB), lambda i: (0, i)),   # all ids, transposed
            # Resident tables (constant index_map -> fetched once).
            # NOTE(v7x): these could be single-buffered (pipeline_mode=
            # pl.Buffered(1)) to halve their VMEM footprint at large vocab.
            pl.BlockSpec((vocab, E), lambda i: (0, 0)),    # emb_v
            pl.BlockSpec((E, vocab), lambda i: (0, 0)),    # emb_u^T
        ],
        out_specs=pl.BlockSpec((1, TB), lambda i: (0, i)),
    )

    per_example = pl.pallas_call(
        skipgram_nll_kernel,
        out_shape=jax.ShapeDtypeStruct((1, B_pad), jnp.float32),
        grid_spec=grid_spec,
        compiler_params=pltpu.CompilerParams(
            dimension_semantics=("parallel",),             # 2x on v7x (2 TC/chip)
            vmem_limit_bytes=32 * 1024 * 1024,
        ),
        interpret=interpret,
    )(center_p, target_row, all_t, emb_v_c, emb_ut_c)

    # torch.mean over per-example log terms (padding columns sliced off).
    return jnp.mean(per_example[0, :B])


if __name__ == "__main__":
    vocab_size, emb_size = 128, 32
    B = 8

    key = jax.random.PRNGKey(0)
    k1, k2, k3, k4 = jax.random.split(key, 4)

    # Deterministic "nn.Embedding" weights.
    emb_v = 0.1 * jax.random.normal(k1, (vocab_size, emb_size), jnp.float32)
    emb_u = 0.1 * jax.random.normal(k2, (vocab_size, emb_size), jnp.float32)

    center_words = jax.random.randint(k3, (B, 1), 0, vocab_size, jnp.int32)
    target_words = jax.random.randint(k4, (B, 1), 0, vocab_size, jnp.int32)
    all_vocabs = jnp.broadcast_to(
        jnp.arange(vocab_size, dtype=jnp.int32), (B, vocab_size))

    nll = skipgram_nll(center_words, target_words, all_vocabs, emb_v, emb_u)
    nll = jax.block_until_ready(nll)

    # Pure-JAX f32 reference with the literal PyTorch formula.
    ce = emb_v[center_words[:, 0]]                    # (B, E)
    te = emb_u[target_words[:, 0]]                    # (B, E)
    ae = emb_u[all_vocabs]                            # (B, V, E)
    sc = jnp.sum(te * ce, axis=1, keepdims=True)      # (B, 1)
    ns = jnp.einsum('bve,be->bv', ae, ce)             # (B, V)
    ref = -jnp.mean(jnp.log(jnp.exp(sc) /
                            jnp.sum(jnp.exp(ns), axis=1, keepdims=True)))

    assert jnp.allclose(nll, ref, rtol=2e-3, atol=2e-3), (float(nll), float(ref))
    print("KERNEL_OK")
</pallas_src>

<mosaic_0001>
module attributes {stable_mosaic.version = 11 : i64} {
  func.func @skipgram_nll_kernel(%arg0: i32, %arg1: memref<8x1xi32, #tpu.memory_space<vmem>>, %arg2: memref<1x8xi32, #tpu.memory_space<vmem>>, %arg3: memref<128x8xi32, #tpu.memory_space<vmem>>, %arg4: memref<128x32xbf16, #tpu.memory_space<vmem>>, %arg5: memref<32x128xbf16, #tpu.memory_space<vmem>>, %arg6: memref<1x8xf32, #tpu.memory_space<vmem>>) attributes {dimension_semantics = [#tpu.dimension_semantics<parallel>], iteration_bounds = array<i64: 1>, scalar_prefetch = 0 : i64, scratch_operands = 0 : i64, tpu.core_type = #tpu.core_type<tc>, window_params = [{transform_indices = @transform_0, window_bounds = array<i64: 8, 1>}, {transform_indices = @transform_1, window_bounds = array<i64: 1, 8>}, {transform_indices = @transform_2, window_bounds = array<i64: 128, 8>}, {pipeline_mode = #tpu.pipeline_mode<synchronous>, transform_indices = @transform_3, window_bounds = array<i64: 128, 32>}, {pipeline_mode = #tpu.pipeline_mode<synchronous>, transform_indices = @transform_4, window_bounds = array<i64: 32, 128>}, {transform_indices = @transform_5, window_bounds = array<i64: 1, 8>}]} {
    %c0 = arith.constant 0 : index
    %c0_0 = arith.constant 0 : index
    %0 = vector.load %arg1[%c0, %c0_0] : memref<8x1xi32, #tpu.memory_space<vmem>>, vector<8x1xi32>
    %c0_1 = arith.constant 0 : index
    %c0_2 = arith.constant 0 : index
    %1 = vector.load %arg2[%c0_1, %c0_2] : memref<1x8xi32, #tpu.memory_space<vmem>>, vector<1x8xi32>
    %c0_3 = arith.constant 0 : index
    %c0_4 = arith.constant 0 : index
    %2 = vector.load %arg4[%c0_3, %c0_4] : memref<128x32xbf16, #tpu.memory_space<vmem>>, vector<128x32xbf16>
    %c0_5 = arith.constant 0 : index
    %c0_6 = arith.constant 0 : index
    %3 = vector.load %arg5[%c0_5, %c0_6] : memref<32x128xbf16, #tpu.memory_space<vmem>>, vector<32x128xbf16>
    %4 = tpu.iota {dimensions = array<i32: 1>} : vector<1x128xi32>
    %5 = tpu.iota {dimensions = array<i32: 2>} : vector<1x1x128xi32>
    %6 = vector.broadcast %0 : vector<8x1xi32> to vector<8x128xi32>
    %7 = vector.broadcast %4 : vector<1x128xi32> to vector<8x128xi32>
    %8 = arith.cmpi eq, %6, %7 : vector<8x128xi32>
    %9 = arith.extui %8 : vector<8x128xi1> to vector<8x128xi32>
    %10 = arith.sitofp %9 : vector<8x128xi32> to vector<8x128xf32>
    %11 = arith.truncf %10 : vector<8x128xf32> to vector<8x128xbf16>
    %cst = arith.constant dense<0.000000e+00> : vector<8x32xf32>
    %12 = tpu.matmul %11, %2, %cst {dimension_numbers = #tpu.dot_dimension_numbers<[1], [0], [0], [1], [0, 0, 1, 1], [], []>} : vector<8x128xbf16>, vector<128x32xbf16>, vector<8x32xf32> -> vector<8x32xf32>
    %13 = arith.truncf %12 : vector<8x32xf32> to vector<8x32xbf16>
    %cst_7 = arith.constant dense<0.000000e+00> : vector<8x128xf32>
    %14 = tpu.matmul %13, %3, %cst_7 {dimension_numbers = #tpu.dot_dimension_numbers<[1], [0], [0], [1], [0, 0, 1, 1], [], []>} : vector<8x32xbf16>, vector<32x128xbf16>, vector<8x128xf32> -> vector<8x128xf32>
    %15 = vector.shape_cast %1 : vector<1x8xi32> to vector<1x8x1xi32>
    %16 = vector.broadcast %15 : vector<1x8x1xi32> to vector<1x8x128xi32>
    %17 = vector.broadcast %5 : vector<1x1x128xi32> to vector<1x8x128xi32>
    %18 = arith.cmpi eq, %16, %17 : vector<1x8x128xi32>
    %19 = vector.shape_cast %14 : vector<8x128xf32> to vector<1x8x128xf32>
    %cst_8 = arith.constant 0.000000e+00 : f32
    %20 = vector.broadcast %cst_8 : f32 to vector<1x8x128xf32>
    %21 = arith.select %18, %19, %20 : vector<1x8x128xi1>, vector<1x8x128xf32>
    %cst_9 = arith.constant dense<0.000000e+00> : vector<1x8xf32>
    %22 = vector.multi_reduction <add>, %21, %cst_9 [2] : vector<1x8x128xf32> to vector<1x8xf32>
    %cst_10 = arith.constant -1.000000e+30 : f32
    %23 = vector.broadcast %cst_10 : f32 to vector<1x8xf32>
    %cst_11 = arith.constant 0.000000e+00 : f32
    %24 = vector.broadcast %cst_11 : f32 to vector<1x8xf32>
    %cst_12 = arith.constant -1.000000e+30 : f32
    %c0_i32 = arith.constant 0 : i32
    %c16_i32 = arith.constant 16 : i32
    %25 = arith.addi %c0_i32, %c16_i32 : i32
    %c1_i32 = arith.constant 1 : i32
    %26:2 = scf.for %arg7 = %c0_i32 to %25 step %c1_i32 iter_args(%arg8 = %23, %arg9 = %24) -> (vector<1x8xf32>, vector<1x8xf32>)  : i32 {
      %c8_i32 = arith.constant 8 : i32
      %31 = arith.muli %arg7, %c8_i32 : i32
      %32 = tpu.assume_multiple %31, 8 : i32
      %33 = arith.index_cast %32 : i32 to index
      %c0_16 = arith.constant 0 : index
      %34 = vector.load %arg3[%33, %c0_16] : memref<128x8xi32, #tpu.memory_space<vmem>>, vector<8x8xi32>
      %35 = vector.shape_cast %34 : vector<8x8xi32> to vector<8x8x1xi32>
      %36 = vector.broadcast %35 : vector<8x8x1xi32> to vector<8x8x128xi32>
      %37 = vector.broadcast %5 : vector<1x1x128xi32> to vector<8x8x128xi32>
      %38 = arith.cmpi eq, %36, %37 : vector<8x8x128xi32>
      %39 = vector.shape_cast %14 : vector<8x128xf32> to vector<1x8x128xf32>
      %cst_17 = arith.constant 0.000000e+00 : f32
      %40 = vector.shape_cast %39 : vector<1x8x128xf32> to vector<1x8x128xf32>
      %41 = vector.broadcast %40 : vector<1x8x128xf32> to vector<8x8x128xf32>
      %42 = vector.broadcast %cst_17 : f32 to vector<8x8x128xf32>
      %43 = arith.select %38, %41, %42 : vector<8x8x128xi1>, vector<8x8x128xf32>
      %cst_18 = arith.constant dense<0.000000e+00> : vector<8x8xf32>
      %44 = vector.multi_reduction <add>, %43, %cst_18 [2] : vector<8x8x128xf32> to vector<8x8xf32>
      %c0_i32_19 = arith.constant 0 : i32
      %45 = vector.broadcast %c0_i32_19 : i32 to vector<8x8xi32>
      %46 = arith.cmpi sge, %34, %45 : vector<8x8xi32>
      %47 = vector.broadcast %cst_12 : f32 to vector<8x8xf32>
      %48 = arith.select %46, %44, %47 : vector<8x8xi1>, vector<8x8xf32>
      %cst_20 = arith.constant dense<0xFF800000> : vector<8xf32>
      %49 = vector.multi_reduction <maximumf>, %48, %cst_20 [0] : vector<8x8xf32> to vector<8xf32>
      %50 = vector.shape_cast %49 : vector<8xf32> to vector<1x8xf32>
      %51 = arith.maximumf %arg8, %50 : vector<1x8xf32>
      %52 = arith.subf %arg8, %51 : vector<1x8xf32>
      %53 = math.exp %52 : vector<1x8xf32>
      %54 = arith.mulf %arg9, %53 : vector<1x8xf32>
      %55 = vector.broadcast %51 : vector<1x8xf32> to vector<8x8xf32>
      %56 = arith.subf %48, %55 : vector<8x8xf32>
      %57 = math.exp %56 : vector<8x8xf32>
      %cst_21 = arith.constant dense<0.000000e+00> : vector<8xf32>
      %58 = vector.multi_reduction <add>, %57, %cst_21 [0] : vector<8x8xf32> to vector<8xf32>
      %59 = vector.shape_cast %58 : vector<8xf32> to vector<1x8xf32>
      %60 = arith.addf %54, %59 : vector<1x8xf32>
      scf.yield %51, %60 : vector<1x8xf32>, vector<1x8xf32>
    }
    %c16_i32_13 = arith.constant 16 : i32
    %27 = math.log %26#1 : vector<1x8xf32>
    %28 = arith.addf %26#0, %27 : vector<1x8xf32>
    %29 = arith.subf %28, %22 : vector<1x8xf32>
    %c0_14 = arith.constant 0 : index
    %c0_15 = arith.constant 0 : index
    %30 = vector.load %arg6[%c0_14, %c0_15] : memref<1x8xf32, #tpu.memory_space<vmem>>, vector<1x8xf32>
    tpu.vector_store %arg6[%c0_14, %c0_15], %29 {strides = array<i32>} : memref<1x8xf32, #tpu.memory_space<vmem>>, vector<1x8xf32>,
    return
  }
  func.func @transform_0(%arg0: i32) -> (i32, i32) {
    %c0_i32 = arith.constant 0 : i32
    %c0_i32_0 = arith.constant 0 : i32
    return %arg0, %c0_i32 : i32, i32
  }
  func.func @transform_1(%arg0: i32) -> (i32, i32) {
    %c0_i32 = arith.constant 0 : i32
    %c0_i32_0 = arith.constant 0 : i32
    return %c0_i32, %arg0 : i32, i32
  }
  func.func @transform_2(%arg0: i32) -> (i32, i32) {
    %c0_i32 = arith.constant 0 : i32
    %c0_i32_0 = arith.constant 0 : i32
    return %c0_i32, %arg0 : i32, i32
  }
  func.func @transform_3(%arg0: i32) -> (i32, i32) {
    %c0_i32 = arith.constant 0 : i32
    %c0_i32_0 = arith.constant 0 : i32
    %c0_i32_1 = arith.constant 0 : i32
    return %c0_i32, %c0_i32_0 : i32, i32
  }
  func.func @transform_4(%arg0: i32) -> (i32, i32) {
    %c0_i32 = arith.constant 0 : i32
    %c0_i32_0 = arith.constant 0 : i32
    %c0_i32_1 = arith.constant 0 : i32
    return %c0_i32, %c0_i32_0 : i32, i32
  }
  func.func @transform_5(%arg0: i32) -> (i32, i32) {
    %c0_i32 = arith.constant 0 : i32
    %c0_i32_0 = arith.constant 0 : i32
    return %c0_i32, %arg0 : i32, i32
  }
}

</mosaic_0001>

<llo_original>
// kernel: tpu_custom_call.1
$region0: #{tpu_custom_call.1}
  #allocation0 [shape = 'u32[]', space=smem, size = 0x4, offset = 0x4, fixed_abs, tag = 'smem constant byte address 0x4 - core index']
  #allocation1 [shape = 'u32[144,128]{1,0:T(1,128)}', space=vmem, size = 0x12000, scoped, tag = 'internal scratch']
  %s0 = inlined_call_operand.vmem [shape: s32[8,1], index: 0, kind: input, shape index: {}]
  %s1 = inlined_call_operand.vmem [shape: s32[1,8], index: 1, kind: input, shape index: {}]
  %s2 = inlined_call_operand.vmem [shape: s32[128,8], index: 2, kind: input, shape index: {}]
  %s3 = inlined_call_operand.vmem [shape: bf16[128,32], index: 3, kind: input, shape index: {}]
  %s4 = inlined_call_operand.vmem [shape: bf16[32,128], index: 4, kind: input, shape index: {}]
  %s5 = inlined_call_operand.hbm [shape: f32[1,8], index: 5, kind: output, shape index: {}]
  %s6 = sld [smem:[#allocation0]]
  $region37: #{tpu_custom_call.1} parent=0
    _
  %s8 = ssub.s32 1, %s6
  %s9 = scalar_select 0, %s8, %s6
  $region1: #{tpu_custom_call.1} parent=0
    #allocation2 [shape = 'u8[512]{0}', space=vmem, size = 0x400, scoped, tag = 'output window, operand 0, single buffered']
    #allocation3 [shape = 's32[1]{0}', space=sflag, size = 0x4, scoped, tag = 'scoped memory for tpu_custom_call.1']
    %10 = vsyncpa [#allocation3], 0
    // Predicated region
    $region2: #{tpu_custom_call.1} parent=1 // pred_check
      _
    $region3: #{tpu_custom_call.1} parent=1 // pred_check_branch
      %12 = sbr.rel (0) target = $region5
    $region4: #{tpu_custom_call.1} parent=1 // pred_region
      _
    $region5: #{tpu_custom_call.1} parent=1 // pred_fallthru
      _
    // Predicated region
    $region6: #{tpu_custom_call.1} parent=1 // pred_check
      _
    $region7: #{tpu_custom_call.1} parent=1 // pred_check_branch
      %14 = sbr.rel (0) target = $region9
    $region8: #{tpu_custom_call.1} parent=1 // pred_region
      _
    $region9: #{tpu_custom_call.1} parent=1 // pred_fallthru
      _
    // Predicated region
    $region10: #{tpu_custom_call.1} parent=1 // pred_check
      _
    $region11: #{tpu_custom_call.1} parent=1 // pred_check_branch
      %16 = sbr.rel (0) target = $region13
    $region12: #{tpu_custom_call.1} parent=1 // pred_region
      _
    $region13: #{tpu_custom_call.1} parent=1 // pred_fallthru
      _
    // Predicated region
    $region14: #{tpu_custom_call.1} parent=1 // pred_check
      _
    $region15: #{tpu_custom_call.1} parent=1 // pred_check_branch
      %18 = sbr.rel (0) target = $region17
    $region16: #{tpu_custom_call.1} parent=1 // pred_region
      _
    $region17: #{tpu_custom_call.1} parent=1 // pred_fallthru
      _
    // Predicated region
    $region18: #{tpu_custom_call.1} parent=1 // pred_check
      _
    $region19: #{tpu_custom_call.1} parent=1 // pred_check_branch
      %20 = sbr.rel (0) target = $region21
    $region20: #{tpu_custom_call.1} parent=1 // pred_region
      _
    $region21: #{tpu_custom_call.1} parent=1 // pred_fallthru
      _
    %v22 = vld [vmem:[%s0] sm:$0xff]
    %v23 = vld [vmem:[%s1] sm:$0x1]
    %v24 = vld [vmem:[%s3] sm:$0xf]
    %v25 = vld [vmem:[%s3 + $0x4] sm:$0xf]
    %v26 = vld [vmem:[%s3 + $0x8] sm:$0xf]
    %v27 = vld [vmem:[%s3 + $0xc] sm:$0xf]
    %v28 = vld [vmem:[%s3 + $0x10] sm:$0xf]
    %v29 = vld [vmem:[%s3 + $0x14] sm:$0xf]
    %v30 = vld [vmem:[%s3 + $0x18] sm:$0xf]
    %v31 = vld [vmem:[%s3 + $0x1c] sm:$0xf]
    %v32 = vld [vmem:[%s3 + $0x20] sm:$0xf]
    %v33 = vld [vmem:[%s3 + $0x24] sm:$0xf]
    %v34 = vld [vmem:[%s3 + $0x28] sm:$0xf]
    %v35 = vld [vmem:[%s3 + $0x2c] sm:$0xf]
    %v36 = vld [vmem:[%s3 + $0x30] sm:$0xf]
    %v37 = vld [vmem:[%s3 + $0x34] sm:$0xf]
    %v38 = vld [vmem:[%s3 + $0x38] sm:$0xf]
    %v39 = vld [vmem:[%s3 + $0x3c] sm:$0xf]
    %v40 = vld [vmem:[%s4] sm:$0xf]
    %v41 = vld [vmem:[%s4 + $0x4] sm:$0xf]
    %v42 = vld [vmem:[%s4 + $0x8] sm:$0xf]
    %v43 = vld [vmem:[%s4 + $0xc] sm:$0xf]
    %v44 = vlaneseq
    %v45 = vand.u32 %v44, 127
    %46 = vset.pattern.permute.xlu0 0
    %47 = vperm.xlu0 %46, %v22
    %v48 = vpop.permute.xlu0 %47
    %vm49 = vcmp.eq.s32.totalorder %v48, %v45
    %v50 = vsel %vm49, 1, 0
    %v51 = vcvt.s32.f32 %v50
    %v52 = vpack.c.bf16 %v51, %v51
    %v69 = vunpack.c.l.b16 %v24
    %v70 = vunpack.c.l.b16 %v25
    %v71 = vunpack.c.l.b16 %v26
    %v72 = vunpack.c.l.b16 %v27
    %v73 = vunpack.c.l.b16 %v28
    %v74 = vunpack.c.l.b16 %v29
    %v75 = vunpack.c.l.b16 %v30
    %v76 = vunpack.c.l.b16 %v31
    %v77 = vunpack.c.l.b16 %v32
    %v78 = vunpack.c.l.b16 %v33
    %v79 = vunpack.c.l.b16 %v34
    %v80 = vunpack.c.l.b16 %v35
    %v81 = vunpack.c.l.b16 %v36
    %v82 = vunpack.c.l.b16 %v37
    %v83 = vunpack.c.l.b16 %v38
    %v84 = vunpack.c.l.b16 %v39
    %v85 = vpack.c.b16 %v70, %v69
    %v86 = vpack.c.b16 %v72, %v71
    %v87 = vpack.c.b16 %v74, %v73
    %v88 = vpack.c.b16 %v76, %v75
    %v89 = vpack.c.b16 %v78, %v77
    %v90 = vpack.c.b16 %v80, %v79
    %v91 = vpack.c.b16 %v82, %v81
    %v92 = vpack.c.b16 %v84, %v83
    %101 = vmatprep.subr.bf16.mxu0 0
    %102 = vmatpush1.bf16.msra.mxu0 %v85
    %103 = vmatprep.subr.bf16.mxu0 0
    %104 = vmatpush1.bf16.msra.mxu0 %v86
    %105 = vmatprep.subr.bf16.mxu0 0
    %106 = vmatpush1.bf16.msra.mxu0 %v87
    %107 = vmatprep.subr.bf16.mxu0 0
    %108 = vmatpush1.bf16.msra.mxu0 %v88
    %109 = vmatprep.subr.bf16.mxu0 0
    %110 = vmatpush1.bf16.msra.mxu0 %v89
    %111 = vmatprep.subr.bf16.mxu0 0
    %112 = vmatpush1.bf16.msra.mxu0 %v90
    %113 = vmatprep.subr.bf16.mxu0 0
    %114 = vmatpush1.bf16.msra.mxu0 %v91
    %115 = vmatprep.subr.bf16.mxu0 0
    %116 = vmatpush1.bf16.msra.mxu0 %v92
    %117 = vmatprep.subr.bf16.mxu0 0
    %118 = vmatpush1.bf16.msra.mxu0 0
    %119 = vmatprep.subr.bf16.mxu0 0
    %120 = vmatpush1.bf16.msra.mxu0 0
    %121 = vmatprep.subr.bf16.mxu0 0
    %122 = vmatpush1.bf16.msra.mxu0 0
    %123 = vmatprep.subr.bf16.mxu0 0
    %124 = vmatpush1.bf16.msra.mxu0 0
    %125 = vmatprep.subr.bf16.mxu0 0
    %126 = vmatpush1.bf16.msra.mxu0 0
    %127 = vmatprep.subr.bf16.mxu0 0
    %128 = vmatpush1.bf16.msra.mxu0 0
    %129 = vmatprep.subr.bf16.mxu0 0
    %130 = vmatpush1.bf16.msra.mxu0 0
    %131 = vmatprep.subr.bf16.mxu0 0
    %132 = vmatpush1.bf16.msra.mxu0 0
    %133 = vmatprep.mubr.bf16.mxu0 0
    %134 = vmatmul.mubr.bf16.gmra.mrb[0].mxu0 %v52
    %v135 = vpop.f32.mrb[0].mxu0
    %v136 = vadd.f32 0.0, %v135
    %v137 = vpop.f32.mrb[0].mxu0
    %v138 = vpop.f32.mrb[0].mxu0
    %v139 = vpop.f32.mrb[0].mxu0
    %140 = vdwg.mxu0
    %v141 = vpack.c.bf16 %v136, %v136
    %v146 = vunpack.c.l.b16 %v40
    %v147 = vunpack.c.l.b16 %v41
    %v148 = vunpack.c.l.b16 %v42
    %v149 = vunpack.c.l.b16 %v43
    %v150 = vpack.c.b16 %v147, %v146
    %v151 = vpack.c.b16 %v149, %v148
    %vm154 = vcmask 261120
    %v156 = vsel %vm154, %v141, 0
    %158 = vmatprep.subr.bf16.mxu0 0
    %159 = vmatpush1.bf16.msra.mxu0 %v150
    %160 = vmatprep.subr.bf16.mxu0 0
    %161 = vmatpush1.bf16.msra.mxu0 %v151
    %162 = vmatprep.subr.bf16.mxu0 0
    %163 = vmatpush1.bf16.msra.mxu0 0
    %164 = vmatprep.subr.bf16.mxu0 0
    %165 = vmatpush1.bf16.msra.mxu0 0
    %166 = vmatprep.subr.bf16.mxu0 0
    %167 = vmatpush1.bf16.msra.mxu0 0
    %168 = vmatprep.subr.bf16.mxu0 0
    %169 = vmatpush1.bf16.msra.mxu0 0
    %170 = vmatprep.subr.bf16.mxu0 0
    %171 = vmatpush1.bf16.msra.mxu0 0
    %172 = vmatprep.subr.bf16.mxu0 0
    %173 = vmatpush1.bf16.msra.mxu0 0
    %174 = vmatprep.subr.bf16.mxu0 0
    %175 = vmatpush1.bf16.msra.mxu0 0
    %176 = vmatprep.subr.bf16.mxu0 0
    %177 = vmatpush1.bf16.msra.mxu0 0
    %178 = vmatprep.subr.bf16.mxu0 0
    %179 = vmatpush1.bf16.msra.mxu0 0
    %180 = vmatprep.subr.bf16.mxu0 0
    %181 = vmatpush1.bf16.msra.mxu0 0
    %182 = vmatprep.subr.bf16.mxu0 0
    %183 = vmatpush1.bf16.msra.mxu0 0
    %184 = vmatprep.subr.bf16.mxu0 0
    %185 = vmatpush1.bf16.msra.mxu0 0
    %186 = vmatprep.subr.bf16.mxu0 0
    %187 = vmatpush1.bf16.msra.mxu0 0
    %188 = vmatprep.subr.bf16.mxu0 0
    %189 = vmatpush1.bf16.msra.mxu0 0
    %190 = vmatprep.mubr.bf16.mxu0 0
    %191 = vmatmul.mubr.bf16.gmra.mrb[0].mxu0 %v156
    %v192 = vpop.f32.mrb[0].mxu0
    %v193 = vadd.f32 0.0, %v192
    %v194 = vpop.f32.mrb[0].mxu0
    %v195 = vpop.f32.mrb[0].mxu0
    %v196 = vpop.f32.mrb[0].mxu0
    %197 = vdwg.mxu0
    %v198 = vlaneseq
    %v199 = vshrl.u32 %v198, 7
    %v200 = vsub.s32 0, %v199
    %v201 = vrot.slane %v23, %v200
    %203 = vbcast.lane.b32.xlu0 %v201, 256
    %v204 = vpop.permute.xlu0 %203
    %vm205 = vcmp.eq.s32.totalorder %v204, %v45
    %v206 = vsel %vm205, %v193, 0.0
    %207 = vadd.xlane.f32.xlu0 %v206
    %v208 = vpop.xlane.xlu0 %207
    loop: start=0, step=1, limit=16
    $region22: #{tpu_custom_call.1} parent=1 // loop_pre_header
      _
    $region23: #{tpu_custom_call.1} parent=1 // loop_header
      %s210 = sphi 0, %s214
      %p211 = scmp.ge.s32.totalorder %s210, 16
      %v215 = vphi -1e+30, %v373
      %v216 = vphi 0.0, %v388
    $region24: #{tpu_custom_call.1} parent=1 // loop_header_branch
      %213 = sbr.rel (%p211) target = $region28
    $region25: #{tpu_custom_call.1} parent=1 // loop_body
      %s217 = smul.u32 %s210, 8
      %s218 = scalar_lea.vmem %s2, %s217
      %v219 = vld [vmem:[%s218] sm:$0xff]
      %v220 = vlaneseq
      %v221 = vshrl.u32 %v220, 7
      %v222 = vsub.s32 0, %v221
      %v223 = vrot.slane %v219, %v222
      %225 = vbcast.lane.b32.xlu0 %v223, 256
      %v226 = vpop.permute.xlu0 %225
      %v227 = vlaneseq
      %v228 = vshrl.u32 %v227, 7
      %v229 = vsub.s32 1, %v228
      %v230 = vrot.slane %v219, %v229
      %232 = vbcast.lane.b32.xlu0 %v230, 256
      %v233 = vpop.permute.xlu0 %232
      %v234 = vlaneseq
      %v235 = vshrl.u32 %v234, 7
      %v236 = vsub.s32 2, %v235
      %v237 = vrot.slane %v219, %v236
      %239 = vbcast.lane.b32.xlu0 %v237, 256
      %v240 = vpop.permute.xlu0 %239
      %v241 = vlaneseq
      %v242 = vshrl.u32 %v241, 7
      %v243 = vsub.s32 3, %v242
      %v244 = vrot.slane %v219, %v243
      %246 = vbcast.lane.b32.xlu0 %v244, 256
      %v247 = vpop.permute.xlu0 %246
      %v248 = vlaneseq
      %v249 = vshrl.u32 %v248, 7
      %v250 = vsub.s32 4, %v249
      %v251 = vrot.slane %v219, %v250
      %253 = vbcast.lane.b32.xlu0 %v251, 256
      %v254 = vpop.permute.xlu0 %253
      %v255 = vlaneseq
      %v256 = vshrl.u32 %v255, 7
      %v257 = vsub.s32 5, %v256
      %v258 = vrot.slane %v219, %v257
      %260 = vbcast.lane.b32.xlu0 %v258, 256
      %v261 = vpop.permute.xlu0 %260
      %v262 = vlaneseq
      %v263 = vshrl.u32 %v262, 7
      %v264 = vsub.s32 6, %v263
      %v265 = vrot.slane %v219, %v264
      %267 = vbcast.lane.b32.xlu0 %v265, 256
      %v268 = vpop.permute.xlu0 %267
      %v269 = vlaneseq
      %v270 = vshrl.u32 %v269, 7
      %v271 = vsub.s32 7, %v270
      %v272 = vrot.slane %v219, %v271
      %274 = vbcast.lane.b32.xlu0 %v272, 256
      %v275 = vpop.permute.xlu0 %274
      %vm276 = vcmp.eq.s32.totalorder %v226, %v45
      %vm277 = vcmp.eq.s32.totalorder %v233, %v45
      %vm278 = vcmp.eq.s32.totalorder %v240, %v45
      %vm279 = vcmp.eq.s32.totalorder %v247, %v45
      %vm280 = vcmp.eq.s32.totalorder %v254, %v45
      %vm281 = vcmp.eq.s32.totalorder %v261, %v45
      %vm282 = vcmp.eq.s32.totalorder %v268, %v45
      %vm283 = vcmp.eq.s32.totalorder %v275, %v45
      %v284 = vsel %vm276, %v193, 0.0
      %v285 = vsel %vm277, %v193, 0.0
      %v286 = vsel %vm278, %v193, 0.0
      %v287 = vsel %vm279, %v193, 0.0
      %v288 = vsel %vm280, %v193, 0.0
      %v289 = vsel %vm281, %v193, 0.0
      %v290 = vsel %vm282, %v193, 0.0
      %v291 = vsel %vm283, %v193, 0.0
      %292 = vadd.xlane.f32.xlu0 %v284
      %v293 = vpop.xlane.xlu0 %292
      %294 = vadd.xlane.f32.xlu0 %v285
      %v295 = vpop.xlane.xlu0 %294
      %296 = vadd.xlane.f32.xlu0 %v286
      %v297 = vpop.xlane.xlu0 %296
      %298 = vadd.xlane.f32.xlu0 %v287
      %v299 = vpop.xlane.xlu0 %298
      %300 = vadd.xlane.f32.xlu0 %v288
      %v301 = vpop.xlane.xlu0 %300
      %302 = vadd.xlane.f32.xlu0 %v289
      %v303 = vpop.xlane.xlu0 %302
      %304 = vadd.xlane.f32.xlu0 %v290
      %v305 = vpop.xlane.xlu0 %304
      %306 = vadd.xlane.f32.xlu0 %v291
      %v307 = vpop.xlane.xlu0 %306
      %vm308 = vcmp.ge.s32.totalorder %v219, 0
      %v317 = vlaneseq
      %v318 = vshrl.u32 %v317, 7
      %v319 = vsub.s32 %v45, %v318
      %v320 = vrot.slane %v293, %v319
      %v321 = vlaneseq
      %v322 = vshrl.u32 %v321, 7
      %v323 = vsub.s32 %v45, %v322
      %v324 = vrot.slane %v295, %v323
      %v325 = vlaneseq
      %v326 = vshrl.u32 %v325, 7
      %v327 = vsub.s32 %v45, %v326
      %v328 = vrot.slane %v297, %v327
      %v329 = vlaneseq
      %v330 = vshrl.u32 %v329, 7
      %v331 = vsub.s32 %v45, %v330
      %v332 = vrot.slane %v299, %v331
      %v333 = vlaneseq
      %v334 = vshrl.u32 %v333, 7
      %v335 = vsub.s32 %v45, %v334
      %v336 = vrot.slane %v301, %v335
      %v337 = vlaneseq
      %v338 = vshrl.u32 %v337, 7
      %v339 = vsub.s32 %v45, %v338
      %v340 = vrot.slane %v303, %v339
      %v341 = vlaneseq
      %v342 = vshrl.u32 %v341, 7
      %v343 = vsub.s32 %v45, %v342
      %v344 = vrot.slane %v305, %v343
      %v345 = vlaneseq
      %v346 = vshrl.u32 %v345, 7
      %v347 = vsub.s32 %v45, %v346
      %v348 = vrot.slane %v307, %v347
      %vm349 = vcmask 1041409
      %v350 = vsel %vm349, %v324, %v320
      %vm351 = vcmask 1042434
      %v352 = vsel %vm351, %v328, %v350
      %vm353 = vcmask 1043459
      %v354 = vsel %vm353, %v332, %v352
      %vm355 = vcmask 1044484
      %v356 = vsel %vm355, %v336, %v354
      %vm357 = vcmask 1045509
      %v358 = vsel %vm357, %v340, %v356
      %vm359 = vcmask 1046534
      %v360 = vsel %vm359, %v344, %v358
      %vm361 = vcmask 1047559
      %v362 = vsel %vm361, %v348, %v360
      %v364 = vsel %vm308, %v362, -1e+30
      %vm365 = vcmask 64512
      %v366 = vsel %vm365, %v364, -inf
      %v367 = vrot.slane %v366, 4
      %v368 = vmax.f32 %v366, %v367
      %v369 = vrot.slane %v368, 2
      %v370 = vmax.f32 %v368, %v369
      %v371 = vrot.slane %v370, 1
      %v372 = vmax.f32 %v370, %v371
      %v373 = vmax.f32 %v215, %v372
      %v374 = vsub.f32 %v215, %v373
      %v375 = vmul.f32 %v374, 1.442695
      %v376 = vpow.pop %v375
      %v377 = vmul.f32 %v216, %v376
      %v378 = vsub.f32 %v364, %v373
      %v379 = vmul.f32 %v378, 1.442695
      %v380 = vpow.pop %v379
      %v381 = vsel %vm365, %v380, 0.0
      %v382 = vrot.slane %v381, 4
      %v383 = vadd.f32 %v381, %v382
      %v384 = vrot.slane %v383, 2
      %v385 = vadd.f32 %v383, %v384
      %v386 = vrot.slane %v385, 1
      %v387 = vadd.f32 %v385, %v386
      %v388 = vadd.f32 %v377, %v387
    $region26: #{tpu_custom_call.1} parent=1 // loop_footer
      %s214 = sadd.s32 1, %s210
    $region27: #{tpu_custom_call.1} parent=1 // loop_footer_branch
      %209 = sbr.rel target = $region23
    $region28: #{tpu_custom_call.1} parent=1 // loop_exit
      _
    %v389 = vlog2.pop %v216
    %v390 = vmul.f32 %v389, 0.6931472
    %v391 = vadd.f32 %v215, %v390
    %v393 = vlaneseq
    %v394 = vshrl.u32 %v393, 7
    %v395 = vsub.s32 %v45, %v394
    %v396 = vrot.slane %v208, %v395
    %v398 = vsub.f32 %v391, %v396
    %vm399 = vcmask 57344
    %400 = vst.msk [vmem:[#allocation2] sm:$0x1] %vm399, %v398
    // Predicated region
    $region29: #{tpu_custom_call.1} parent=1 // pred_check
      _
    $region30: #{tpu_custom_call.1} parent=1 // pred_check_branch
      %402 = sbr.rel (0) target = $region32
    $region31: #{tpu_custom_call.1} parent=1 // pred_region
      %s404 = ssub.s32 16, 16
      %405 = vsyncadd [#allocation3], %s404
      %s407 = sshll.u32 [#allocation2], 4
      %s408 = int_to_ptr.vmem [resolvable:$true] %s407
      %410 = dma.vmem_to_hbm [thread:$0]  %s408, 16, %s5, [#allocation3]
    $region32: #{tpu_custom_call.1} parent=1 // pred_fallthru
      _
    // Predicated region
    $region33: #{tpu_custom_call.1} parent=1 // pred_check
      _
    $region34: #{tpu_custom_call.1} parent=1 // pred_check_branch
      %412 = sbr.rel (0) target = $region36
    $region35: #{tpu_custom_call.1} parent=1 // pred_region
      %413 = dma.done [#allocation3], 16
    $region36: #{tpu_custom_call.1} parent=1 // pred_fallthru
      _
    %414 = vsyncpa [#allocation3], 1

</llo_original>
